<compile_context>
chip_gen: v6e
topology: v6e:2x2x1
jax: 0.10.0
libtpu: 0.0.40
codegen_flags: <defaults>
</compile_context>

<pallas_src>
import functools

import numpy as np
import jax
import jax.numpy as jnp
from jax import lax
from jax.experimental import pallas as pl
from jax.experimental.pallas import tpu as pltpu


# --------------------------- stage construction ---------------------------

def _pick_tile(t_true):
    """Input-time tile size (multiples of 128 when tiling, else the full T)."""
    if t_true >= 512:
        return 256
    if t_true >= 128:
        return 128
    return t_true


def _time_matrices(ti, scale):
    """Banded matrices implementing nearest-stretch + (2s+1) time box conv.

    W is returned in bf16: every entry is an exact small integer (<= scale),
    so bf16 is lossless and halves the constant's DMA / VMEM footprint.
    """
    s = scale
    to = ti * s
    w = np.zeros((ti, to), np.float32)
    wh = np.zeros((2, to), np.float32)     # row 0: left halo col, row 1: right halo col
    for q in range(ti):
        for p in range(s):
            n = q * s + p
            w[q, n] += s                   # center column tap (weight s)
            if q - 1 >= 0:
                w[q - 1, n] += s - p       # left neighbour tap
            else:
                wh[0, n] += s - p          # provided by the left halo column
            if q + 1 < ti:
                w[q + 1, n] += p + 1       # right neighbour tap
            else:
                wh[1, n] += p + 1          # provided by the right halo column
    return jnp.asarray(w, dtype=jnp.bfloat16), jnp.asarray(wh)


def _halo_columns(x, ti, n_tiles):
    """(B, n_tiles, C, 2) halo columns x[.., t*ti - 1] / x[.., (t+1)*ti] per tile."""
    needed = n_tiles * ti
    left = jnp.pad(x, ((0, 0), (0, 0), (1, 0)))[:, :, 0:needed:ti]
    right = jnp.pad(x, ((0, 0), (0, 0), (0, 1)))[:, :, ti:needed + 1:ti]
    h = jnp.stack([left, right], axis=-1)          # (B, C, n_tiles, 2)
    return jnp.transpose(h, (0, 2, 1, 3)).astype(jnp.float32)


# --------------------------------- kernel ---------------------------------

def _stage_kernel(x_ref, h_ref, w_ref, wh_ref, o_ref, *, scale, freq_k,
                  tile_in, n_tiles, t_true, halo_resident,
                  activation, act_params):
    s = scale

    # Split the f32 input into hi/lo bf16 parts: two native bf16 MXU passes
    # with f32 accumulation reproduce the f32 matmul to ~1e-5 (W is exact in
    # bf16) instead of the 6-pass Precision.HIGHEST decomposition.
    x = x_ref[0]                                                # (C, Ti) f32
    x_hi = x.astype(jnp.bfloat16)
    x_lo = (x - x_hi.astype(jnp.float32)).astype(jnp.bfloat16)

    # stretch + time box filter + phase interleave: banded matmuls on the MXU
    acc = jnp.dot(x_hi, w_ref[...], preferred_element_type=jnp.float32)
    acc += jnp.dot(x_lo, w_ref[...], preferred_element_type=jnp.float32)

    # +-1 input-column halo correction (grid-resident operand, no per-step DMA)
    if halo_resident:
        h = h_ref[pl.program_id(1)]                             # (C, 2) f32
    else:
        h = h_ref[0]                                            # (C, 2) f32
    acc = acc + h[:, 0:1] * wh_ref[0:1, :] + h[:, 1:2] * wh_ref[1:2, :]

    y = acc * (1.0 / float(freq_k * (2 * s + 1)))

    if activation == "ReLU":
        y = jnp.maximum(y, 0.0)
    elif activation == "LeakyReLU":
        slope = float(act_params.get("negative_slope", 0.01))
        y = jnp.where(y > 0, y, slope * y)
    # TODO(synk): other torch.nn activations are rejected in the wrapper.

    out = y.astype(o_ref.dtype)
    if n_tiles * tile_in == t_true:
        o_ref[0] = out                     # single lane-dense unmasked store
    else:
        last = n_tiles - 1
        t = pl.program_id(1)

        @pl.when(t != last)
        def _():
            o_ref[0] = out                 # interior tiles: no mask work at all

        @pl.when(t == last)
        def _():
            # Zero columns past the true signal length so the next stage still
            # sees exact conv zero-padding at the right boundary.
            limit = (t_true - last * tile_in) * s               # static
            col = lax.broadcasted_iota(jnp.int32, out.shape, 1)
            o_ref[0] = jnp.where(col < limit, out, 0.0)


# ------------------------------- stage wrapper -----------------------------

def _upsample_stage(x, t_true, scale, freq_k, activation, act_params):
    B, C, L = x.shape          # L >= t_true; any columns past t_true are zero
    assert 1 <= scale <= 256   # W entries must stay exact in bf16

    # Exact f32 freq-axis window sum (commutes with the time conv) done once in
    # the wrapper; the kernel never carries a (C, C) operand.
    if freq_k > 1:
        fp = (freq_k - 1) // 2
        xp = jnp.pad(x, ((0, 0), (fp, fp), (0, 0)))
        x = sum(xp[:, d:d + C, :] for d in range(freq_k))

    ti = _pick_tile(t_true)
    n_tiles = -(-t_true // ti)         # ceil: tile the TRUE length only
    needed = n_tiles * ti
    to = ti * scale

    if L < needed:
        x = jnp.pad(x, ((0, 0), (0, 0), (0, needed - L)))
    elif L > needed and ti % 128 != 0:
        x = x[:, :, :needed]           # never triggers in practice; keeps blocks legal
    # If L > needed and ti is lane aligned, the grid simply does not read the
    # stale zero tail left by the previous stage (no padding carried forward).

    w, wh = _time_matrices(ti, scale)
    halos = _halo_columns(x, ti, n_tiles)

    # Keep the whole per-batch halo slab resident in VMEM unless it is large.
    halo_vmem = n_tiles * ((C + 7) // 8) * 8 * 128 * 4
    halo_resident = halo_vmem <= (2 << 20)
    if halo_resident:
        halo_spec = pl.BlockSpec((None, n_tiles, C, 2), lambda b, t: (b, 0, 0, 0))
    else:
        halo_spec = pl.BlockSpec((None, 1, C, 2), lambda b, t: (b, t, 0, 0))

    kernel = functools.partial(
        _stage_kernel, scale=scale, freq_k=freq_k, tile_in=ti,
        n_tiles=n_tiles, t_true=t_true, halo_resident=halo_resident,
        activation=activation, act_params=act_params)

    out = pl.pallas_call(
        kernel,
        out_shape=jax.ShapeDtypeStruct((B, C, needed * scale), jnp.float32),
        grid=(B, n_tiles),
        in_specs=[
            pl.BlockSpec((1, C, ti), lambda b, t: (b, 0, t)),    # input time tile
            halo_spec,                                           # halo columns
            pl.BlockSpec((ti, to), lambda b, t: (0, 0)),         # W  (constant, fetched once)
            pl.BlockSpec((2, to), lambda b, t: (0, 0)),          # Wh (constant, fetched once)
        ],
        out_specs=pl.BlockSpec((1, C, to), lambda b, t: (b, 0, t)),
        compiler_params=pltpu.CompilerParams(
            dimension_semantics=("parallel", "parallel")),
    )(x.astype(jnp.float32), halos, w, wh)
    return out, t_true * scale


def upsample_network(c, upsample_scales, *, nonlinear_activation=None,
                     nonlinear_activation_params=None,
                     interpolate_mode="nearest", freq_axis_kernel_size=1):
    """JAX/Pallas equivalent of UpsampleNetwork.forward.  c: (B, C, T_feats)."""
    assert (freq_axis_kernel_size - 1) % 2 == 0, "even freq axis kernel size unsupported"
    if interpolate_mode != "nearest":
        # TODO(synk): only 'nearest' interpolation is implemented.
        raise NotImplementedError(f"interpolate_mode={interpolate_mode!r}")
    if nonlinear_activation not in (None, "ReLU", "LeakyReLU"):
        raise ValueError(f"unsupported nonlinear_activation: {nonlinear_activation!r}")
    act_params = dict(nonlinear_activation_params or {})

    x = c.astype(jnp.float32)
    t_true = x.shape[-1]
    for s in upsample_scales:
        x, t_true = _upsample_stage(x, t_true, int(s), int(freq_axis_kernel_size),
                                    nonlinear_activation, act_params)
    if x.shape[-1] != t_true:
        x = x[:, :, :t_true]
    return x


# --------------------------- reference (numpy) ---------------------------

def _ref_forward(c_np, upsample_scales, freq_k=1, activation=None, act_params=None):
    x = np.asarray(c_np)[:, None].astype(np.float32)   # (B, 1, C, T)
    for s in upsample_scales:
        x = np.repeat(x, s, axis=-1)                    # Stretch2d (nearest)
        B, _, C, T = x.shape
        fp = (freq_k - 1) // 2
        xp = np.pad(x, ((0, 0), (0, 0), (fp, fp), (s, s)))
        out = np.zeros((B, 1, C, T), np.float32)
        for df in range(freq_k):
            for dt in range(2 * s + 1):
                out += xp[:, :, df:df + C, dt:dt + T]
        x = out * (1.0 / (freq_k * (2 * s + 1)))
        if activation == "ReLU":
            x = np.maximum(x, 0.0)
        elif activation == "LeakyReLU":
            ns = float((act_params or {}).get("negative_slope", 0.01))
            x = np.where(x > 0, x, ns * x)
    return x[:, 0]


if __name__ == "__main__":
    # case 1: default config (freq_k=1, no activation), two stages, tiny T
    B, C, T = 2, 8, 16
    scales = (2, 3)
    c1 = jax.random.normal(jax.random.PRNGKey(0), (B, C, T), dtype=jnp.float32)
    fwd1 = jax.jit(functools.partial(upsample_network, upsample_scales=scales))
    y1 = jax.block_until_ready(fwd1(c1))
    assert y1.shape == (B, C, T * int(np.prod(scales))), y1.shape
    np.testing.assert_allclose(np.asarray(y1), _ref_forward(c1, scales, freq_k=1),
                               rtol=1e-4, atol=1e-4)

    # case 2: freq-axis kernel size 3 + ReLU activation
    c2 = jax.random.normal(jax.random.PRNGKey(1), (1, 8, 12), dtype=jnp.float32)
    fwd2 = jax.jit(functools.partial(upsample_network, upsample_scales=(3,),
                                     freq_axis_kernel_size=3,
                                     nonlinear_activation="ReLU"))
    y2 = jax.block_until_ready(fwd2(c2))
    np.testing.assert_allclose(np.asarray(y2),
                               _ref_forward(c2, (3,), freq_k=3, activation="ReLU"),
                               rtol=1e-4, atol=1e-4)

    # case 3: time-tiled path (T > tile, non-divisible -> padding + masking + halos)
    c3 = jax.random.normal(jax.random.PRNGKey(2), (1, 8, 320), dtype=jnp.float32)
    fwd3 = jax.jit(functools.partial(upsample_network, upsample_scales=(2,)))
    y3 = jax.block_until_ready(fwd3(c3))
    assert y3.shape == (1, 8, 640), y3.shape
    np.testing.assert_allclose(np.asarray(y3), _ref_forward(c3, (2,), freq_k=1),
                               rtol=1e-4, atol=1e-4)

    # case 4: two tiled stages with LeakyReLU; checks that stage-1 padding is
    # not carried into stage 2 (stage 2's grid covers less than its input).
    c4 = jax.random.normal(jax.random.PRNGKey(3), (1, 8, 129), dtype=jnp.float32)
    fwd4 = jax.jit(functools.partial(upsample_network, upsample_scales=(4, 4),
                                     nonlinear_activation="LeakyReLU",
                                     nonlinear_activation_params={"negative_slope": 0.2}))
    y4 = jax.block_until_ready(fwd4(c4))
    assert y4.shape == (1, 8, 129 * 16), y4.shape
    np.testing.assert_allclose(
        np.asarray(y4),
        _ref_forward(c4, (4, 4), freq_k=1, activation="LeakyReLU",
                     act_params={"negative_slope": 0.2}),
        rtol=1e-4, atol=1e-4)

    print("KERNEL_OK")
</pallas_src>

<mosaic_0001>
module attributes {stable_mosaic.version = 11 : i64} {
  func.func @_stage_kernel(%arg0: i32, %arg1: i32, %arg2: memref<1x8x16xf32, #tpu.memory_space<vmem>>, %arg3: memref<1x1x8x2xf32, #tpu.memory_space<vmem>>, %arg4: memref<16x32xbf16, #tpu.memory_space<vmem>>, %arg5: memref<2x32xf32, #tpu.memory_space<vmem>>, %arg6: memref<1x8x32xf32, #tpu.memory_space<vmem>>) attributes {dimension_semantics = [#tpu.dimension_semantics<parallel>, #tpu.dimension_semantics<parallel>], iteration_bounds = array<i64: 2, 1>, scalar_prefetch = 0 : i64, scratch_operands = 0 : i64, tpu.core_type = #tpu.core_type<tc>, window_params = [{transform_indices = @transform_0, window_bounds = array<i64: 1, 8, 16>}, {transform_indices = @transform_1, window_bounds = array<i64: 1, 1, 8, 2>}, {pipeline_mode = #tpu.pipeline_mode<synchronous>, transform_indices = @transform_2, window_bounds = array<i64: 16, 32>}, {pipeline_mode = #tpu.pipeline_mode<synchronous>, transform_indices = @transform_3, window_bounds = array<i64: 2, 32>}, {transform_indices = @transform_4, window_bounds = array<i64: 1, 8, 32>}]} {
    %c0 = arith.constant 0 : index
    %c0_0 = arith.constant 0 : index
    %c0_1 = arith.constant 0 : index
    %0 = vector.load %arg2[%c0, %c0_0, %c0_1] : memref<1x8x16xf32, #tpu.memory_space<vmem>>, vector<1x8x16xf32>
    %1 = vector.shape_cast %0 : vector<1x8x16xf32> to vector<8x16xf32>
    %2 = arith.truncf %1 : vector<8x16xf32> to vector<8x16xbf16>
    %3 = arith.extf %2 : vector<8x16xbf16> to vector<8x16xf32>
    %4 = arith.subf %1, %3 : vector<8x16xf32>
    %5 = arith.truncf %4 : vector<8x16xf32> to vector<8x16xbf16>
    %c0_2 = arith.constant 0 : index
    %c0_3 = arith.constant 0 : index
    %6 = vector.load %arg4[%c0_2, %c0_3] : memref<16x32xbf16, #tpu.memory_space<vmem>>, vector<16x32xbf16>
    %cst = arith.constant dense<0.000000e+00> : vector<8x32xf32>
    %7 = tpu.matmul %2, %6, %cst {dimension_numbers = #tpu.dot_dimension_numbers<[1], [0], [0], [1], [0, 0, 1, 1], [], []>} : vector<8x16xbf16>, vector<16x32xbf16>, vector<8x32xf32> -> vector<8x32xf32>
    %c0_4 = arith.constant 0 : index
    %c0_5 = arith.constant 0 : index
    %8 = vector.load %arg4[%c0_4, %c0_5] : memref<16x32xbf16, #tpu.memory_space<vmem>>, vector<16x32xbf16>
    %cst_6 = arith.constant dense<0.000000e+00> : vector<8x32xf32>
    %9 = tpu.matmul %5, %8, %cst_6 {dimension_numbers = #tpu.dot_dimension_numbers<[1], [0], [0], [1], [0, 0, 1, 1], [], []>} : vector<8x16xbf16>, vector<16x32xbf16>, vector<8x32xf32> -> vector<8x32xf32>
    %10 = arith.addf %7, %9 : vector<8x32xf32>
    %c0_7 = arith.constant 0 : index
    %11 = arith.index_cast %arg1 : i32 to index
    %c0_8 = arith.constant 0 : index
    %c0_9 = arith.constant 0 : index
    %12 = vector.load %arg3[%c0_7, %11, %c0_8, %c0_9] : memref<1x1x8x2xf32, #tpu.memory_space<vmem>>, vector<1x1x8x2xf32>
    %13 = vector.shape_cast %12 : vector<1x1x8x2xf32> to vector<8x2xf32>
    %14 = vector.extract_strided_slice %13 {offsets = [0, 0], sizes = [8, 1], strides = [1, 1]} : vector<8x2xf32> to vector<8x1xf32>
    %c0_10 = arith.constant 0 : index
    %c0_11 = arith.constant 0 : index
    %15 = vector.load %arg5[%c0_10, %c0_11] : memref<2x32xf32, #tpu.memory_space<vmem>>, vector<1x32xf32>
    %16 = vector.broadcast %14 : vector<8x1xf32> to vector<8x32xf32>
    %17 = vector.broadcast %15 : vector<1x32xf32> to vector<8x32xf32>
    %18 = arith.mulf %16, %17 : vector<8x32xf32>
    %19 = arith.addf %10, %18 : vector<8x32xf32>
    %20 = vector.extract_strided_slice %13 {offsets = [0, 1], sizes = [8, 1], strides = [1, 1]} : vector<8x2xf32> to vector<8x1xf32>
    %c1 = arith.constant 1 : index
    %c0_12 = arith.constant 0 : index
    %21 = vector.load %arg5[%c1, %c0_12] : memref<2x32xf32, #tpu.memory_space<vmem>>, vector<1x32xf32>
    %22 = vector.broadcast %20 : vector<8x1xf32> to vector<8x32xf32>
    %23 = vector.broadcast %21 : vector<1x32xf32> to vector<8x32xf32>
    %24 = arith.mulf %22, %23 : vector<8x32xf32>
    %25 = arith.addf %19, %24 : vector<8x32xf32>
    %cst_13 = arith.constant 2.000000e-01 : f32
    %26 = vector.broadcast %cst_13 : f32 to vector<8x32xf32>
    %27 = arith.mulf %25, %26 : vector<8x32xf32>
    %c0_14 = arith.constant 0 : index
    %c0_15 = arith.constant 0 : index
    %c0_16 = arith.constant 0 : index
    %28 = vector.load %arg6[%c0_14, %c0_15, %c0_16] : memref<1x8x32xf32, #tpu.memory_space<vmem>>, vector<1x8x32xf32>
    %29 = vector.shape_cast %28 : vector<1x8x32xf32> to vector<8x32xf32>
    %30 = vector.shape_cast %27 : vector<8x32xf32> to vector<1x8x32xf32>
    tpu.vector_store %arg6[%c0_14, %c0_15, %c0_16], %30 {strides = array<i32>} : memref<1x8x32xf32, #tpu.memory_space<vmem>>, vector<1x8x32xf32>,
    return
  }
  func.func @transform_0(%arg0: i32, %arg1: i32) -> (i32, i32, i32) {
    %c0_i32 = arith.constant 0 : i32
    %c0_i32_0 = arith.constant 0 : i32
    return %arg0, %c0_i32, %arg1 : i32, i32, i32
  }
  func.func @transform_1(%arg0: i32, %arg1: i32) -> (i32, i32, i32, i32) {
    %c0_i32 = arith.constant 0 : i32
    %c0_i32_0 = arith.constant 0 : i32
    %c0_i32_1 = arith.constant 0 : i32
    %c0_i32_2 = arith.constant 0 : i32
    return %arg0, %c0_i32, %c0_i32_0, %c0_i32_1 : i32, i32, i32, i32
  }
  func.func @transform_2(%arg0: i32, %arg1: i32) -> (i32, i32) {
    %c0_i32 = arith.constant 0 : i32
    %c0_i32_0 = arith.constant 0 : i32
    %c0_i32_1 = arith.constant 0 : i32
    return %c0_i32, %c0_i32_0 : i32, i32
  }
  func.func @transform_3(%arg0: i32, %arg1: i32) -> (i32, i32) {
    %c0_i32 = arith.constant 0 : i32
    %c0_i32_0 = arith.constant 0 : i32
    %c0_i32_1 = arith.constant 0 : i32
    return %c0_i32, %c0_i32_0 : i32, i32
  }
  func.func @transform_4(%arg0: i32, %arg1: i32) -> (i32, i32, i32) {
    %c0_i32 = arith.constant 0 : i32
    %c0_i32_0 = arith.constant 0 : i32
    return %arg0, %c0_i32, %arg1 : i32, i32, i32
  }
}

module attributes {stable_mosaic.version = 11 : i64} {
  func.func @_stage_kernel(%arg0: i32, %arg1: i32, %arg2: memref<1x8x32xf32, #tpu.memory_space<vmem>>, %arg3: memref<1x1x8x2xf32, #tpu.memory_space<vmem>>, %arg4: memref<32x96xbf16, #tpu.memory_space<vmem>>, %arg5: memref<2x96xf32, #tpu.memory_space<vmem>>, %arg6: memref<1x8x96xf32, #tpu.memory_space<vmem>>) attributes {dimension_semantics = [#tpu.dimension_semantics<parallel>, #tpu.dimension_semantics<parallel>], iteration_bounds = array<i64: 2, 1>, scalar_prefetch = 0 : i64, scratch_operands = 0 : i64, tpu.core_type = #tpu.core_type<tc>, window_params = [{transform_indices = @transform_0, window_bounds = array<i64: 1, 8, 32>}, {transform_indices = @transform_1, window_bounds = array<i64: 1, 1, 8, 2>}, {pipeline_mode = #tpu.pipeline_mode<synchronous>, transform_indices = @transform_2, window_bounds = array<i64: 32, 96>}, {pipeline_mode = #tpu.pipeline_mode<synchronous>, transform_indices = @transform_3, window_bounds = array<i64: 2, 96>}, {transform_indices = @transform_4, window_bounds = array<i64: 1, 8, 96>}]} {
    %c0 = arith.constant 0 : index
    %c0_0 = arith.constant 0 : index
    %c0_1 = arith.constant 0 : index
    %0 = vector.load %arg2[%c0, %c0_0, %c0_1] : memref<1x8x32xf32, #tpu.memory_space<vmem>>, vector<1x8x32xf32>
    %1 = vector.shape_cast %0 : vector<1x8x32xf32> to vector<8x32xf32>
    %2 = arith.truncf %1 : vector<8x32xf32> to vector<8x32xbf16>
    %3 = arith.extf %2 : vector<8x32xbf16> to vector<8x32xf32>
    %4 = arith.subf %1, %3 : vector<8x32xf32>
    %5 = arith.truncf %4 : vector<8x32xf32> to vector<8x32xbf16>
    %c0_2 = arith.constant 0 : index
    %c0_3 = arith.constant 0 : index
    %6 = vector.load %arg4[%c0_2, %c0_3] : memref<32x96xbf16, #tpu.memory_space<vmem>>, vector<32x96xbf16>
    %cst = arith.constant dense<0.000000e+00> : vector<8x96xf32>
    %7 = tpu.matmul %2, %6, %cst {dimension_numbers = #tpu.dot_dimension_numbers<[1], [0], [0], [1], [0, 0, 1, 1], [], []>} : vector<8x32xbf16>, vector<32x96xbf16>, vector<8x96xf32> -> vector<8x96xf32>
    %c0_4 = arith.constant 0 : index
    %c0_5 = arith.constant 0 : index
    %8 = vector.load %arg4[%c0_4, %c0_5] : memref<32x96xbf16, #tpu.memory_space<vmem>>, vector<32x96xbf16>
    %cst_6 = arith.constant dense<0.000000e+00> : vector<8x96xf32>
    %9 = tpu.matmul %5, %8, %cst_6 {dimension_numbers = #tpu.dot_dimension_numbers<[1], [0], [0], [1], [0, 0, 1, 1], [], []>} : vector<8x32xbf16>, vector<32x96xbf16>, vector<8x96xf32> -> vector<8x96xf32>
    %10 = arith.addf %7, %9 : vector<8x96xf32>
    %c0_7 = arith.constant 0 : index
    %11 = arith.index_cast %arg1 : i32 to index
    %c0_8 = arith.constant 0 : index
    %c0_9 = arith.constant 0 : index
    %12 = vector.load %arg3[%c0_7, %11, %c0_8, %c0_9] : memref<1x1x8x2xf32, #tpu.memory_space<vmem>>, vector<1x1x8x2xf32>
    %13 = vector.shape_cast %12 : vector<1x1x8x2xf32> to vector<8x2xf32>
    %14 = vector.extract_strided_slice %13 {offsets = [0, 0], sizes = [8, 1], strides = [1, 1]} : vector<8x2xf32> to vector<8x1xf32>
    %c0_10 = arith.constant 0 : index
    %c0_11 = arith.constant 0 : index
    %15 = vector.load %arg5[%c0_10, %c0_11] : memref<2x96xf32, #tpu.memory_space<vmem>>, vector<1x96xf32>
    %16 = vector.broadcast %14 : vector<8x1xf32> to vector<8x96xf32>
    %17 = vector.broadcast %15 : vector<1x96xf32> to vector<8x96xf32>
    %18 = arith.mulf %16, %17 : vector<8x96xf32>
    %19 = arith.addf %10, %18 : vector<8x96xf32>
    %20 = vector.extract_strided_slice %13 {offsets = [0, 1], sizes = [8, 1], strides = [1, 1]} : vector<8x2xf32> to vector<8x1xf32>
    %c1 = arith.constant 1 : index
    %c0_12 = arith.constant 0 : index
    %21 = vector.load %arg5[%c1, %c0_12] : memref<2x96xf32, #tpu.memory_space<vmem>>, vector<1x96xf32>
    %22 = vector.broadcast %20 : vector<8x1xf32> to vector<8x96xf32>
    %23 = vector.broadcast %21 : vector<1x96xf32> to vector<8x96xf32>
    %24 = arith.mulf %22, %23 : vector<8x96xf32>
    %25 = arith.addf %19, %24 : vector<8x96xf32>
    %cst_13 = arith.constant 0.142857149 : f32
    %26 = vector.broadcast %cst_13 : f32 to vector<8x96xf32>
    %27 = arith.mulf %25, %26 : vector<8x96xf32>
    %c0_14 = arith.constant 0 : index
    %c0_15 = arith.constant 0 : index
    %c0_16 = arith.constant 0 : index
    %28 = vector.load %arg6[%c0_14, %c0_15, %c0_16] : memref<1x8x96xf32, #tpu.memory_space<vmem>>, vector<1x8x96xf32>
    %29 = vector.shape_cast %28 : vector<1x8x96xf32> to vector<8x96xf32>
    %30 = vector.shape_cast %27 : vector<8x96xf32> to vector<1x8x96xf32>
    tpu.vector_store %arg6[%c0_14, %c0_15, %c0_16], %30 {strides = array<i32>} : memref<1x8x96xf32, #tpu.memory_space<vmem>>, vector<1x8x96xf32>,
    return
  }
  func.func @transform_0(%arg0: i32, %arg1: i32) -> (i32, i32, i32) {
    %c0_i32 = arith.constant 0 : i32
    %c0_i32_0 = arith.constant 0 : i32
    return %arg0, %c0_i32, %arg1 : i32, i32, i32
  }
  func.func @transform_1(%arg0: i32, %arg1: i32) -> (i32, i32, i32, i32) {
    %c0_i32 = arith.constant 0 : i32
    %c0_i32_0 = arith.constant 0 : i32
    %c0_i32_1 = arith.constant 0 : i32
    %c0_i32_2 = arith.constant 0 : i32
    return %arg0, %c0_i32, %c0_i32_0, %c0_i32_1 : i32, i32, i32, i32
  }
  func.func @transform_2(%arg0: i32, %arg1: i32) -> (i32, i32) {
    %c0_i32 = arith.constant 0 : i32
    %c0_i32_0 = arith.constant 0 : i32
    %c0_i32_1 = arith.constant 0 : i32
    return %c0_i32, %c0_i32_0 : i32, i32
  }
  func.func @transform_3(%arg0: i32, %arg1: i32) -> (i32, i32) {
    %c0_i32 = arith.constant 0 : i32
    %c0_i32_0 = arith.constant 0 : i32
    %c0_i32_1 = arith.constant 0 : i32
    return %c0_i32, %c0_i32_0 : i32, i32
  }
  func.func @transform_4(%arg0: i32, %arg1: i32) -> (i32, i32, i32) {
    %c0_i32 = arith.constant 0 : i32
    %c0_i32_0 = arith.constant 0 : i32
    return %arg0, %c0_i32, %arg1 : i32, i32, i32
  }
}

</mosaic_0001>

<llo_original>
// kernel: upsample_network.3
$region0: #{upsample_network.3}
  #allocation0 [shape = 'u32[]', space=smem, size = 0x4, offset = 0x4, fixed_abs, tag = 'smem constant byte address 0x4 - core index']
  #allocation1 [shape = 'u32[144,128]{1,0:T(1,128)}', space=vmem, size = 0x12000, scoped, tag = 'internal scratch']
  %s0 = inlined_call_operand.vmem [shape: f32[2,8,32], index: 0, kind: input, shape index: {}]
  %s1 = inlined_call_operand.vmem [shape: f32[2,1,8,2], index: 1, kind: input, shape index: {}]
  %s2 = inlined_call_operand.vmem [shape: bf16[32,96], index: 2, kind: input, shape index: {}]
  %s3 = inlined_call_operand.vmem [shape: f32[2,96], index: 3, kind: input, shape index: {}]
  %s4 = inlined_call_operand.hbm [shape: f32[2,8,96], index: 4, kind: output, shape index: {}]
  %s5 = sld [smem:[#allocation0]]
  $region49: #{upsample_network.3} parent=0
    _
  %s7 = ssub.s32 1, %s5
  %s8 = scalar_select 0, %s7, %s5
  $region1: #{upsample_network.3} parent=0
    #allocation2 [shape = 'u8[8192]{0}', space=vmem, size = 0x2000, scoped, tag = 'output window, operand 0']
    #allocation3 [shape = 's32[2]{0}', space=sflag, size = 0x8, scoped, tag = 'scoped memory for upsample_network.3']
    %9 = vsyncpa [#allocation3], 0
    %s10 = scalar_lea.sflag [#allocation3], 1
    %11 = vsyncpa %s10, 0
    loop: start=0, step=1, limit=4
    $region2: #{upsample_network.3} parent=1 // loop_pre_header
      _
    $region3: #{upsample_network.3} parent=1 // loop_header
      %s13 = sphi 0, %s17
      %p14 = scmp.ge.s32.totalorder %s13, 4
      %s20 = sphi 0, %s32
      %s21 = sphi 0, %s28
      %s22 = sphi 0, %s20
      %s23 = sphi 0, %s21
      %s24 = sphi 0, %s22
      %s25 = sphi 0, %s23
      %s37 = sphi 0, %s39
      %s40 = sphi 0, %s37
      %s41 = sphi 0, %s40
      %s57 = sphi 0, %s41
      %s63 = sphi 0, %s65
      %s66 = sphi 0, %s63
      %s67 = sphi 0, %s66
      %s83 = sphi 0, %s67
      %s87 = sphi 0, %s87
      %s89 = sphi 0, %s87
      %s90 = sphi 0, %s89
      %s104 = sphi 0, %s90
      %s108 = sphi 0, %s108
      %s110 = sphi 0, %s108
      %s111 = sphi 0, %s110
      %s125 = sphi 0, %s111
      %s133 = sphi 0, %s135
      %s136 = sphi 0, %s133
      %s137 = sphi 0, %s136
      %s153 = sphi 0, %s137
    $region4: #{upsample_network.3} parent=1 // loop_header_branch
      %16 = sbr.rel (%p14) target = $region8
    $region5: #{upsample_network.3} parent=1 // loop_body
      %s18 = ssub.s32 %s13, 1
      %s19 = ssub.s32 %s13, 2
      %s26 = sadd.s32 1, %s21
      %p27 = scmp.ge.s32.totalorder %s26, 1
      %s28 = scalar_select %p27, 0, %s26
      %s29 = sadd.s32 1, %s20
      %s30 = scalar_select %p27, %s29, %s20
      %p31 = scmp.ge.s32.totalorder %s30, 2
      %s32 = scalar_select %p31, 0, %s30
      %s33 = ssub.s32 %s20, %s32
      %s34 = ssub.s32 %s21, %s28
      %s35 = sor.u32 %s33, %s34
      %p36 = scmp.eq.s32.totalorder %s35, 0
      %s38 = sadd.s32 %s37, 1
      %s39 = scalar_select %p36, %s37, %s38
      %p42 = pneg %p36
      %p43 = scmp.eq.s32.totalorder %s13, 1
      %p44 = por %p42, %p43
      %p45 = scmp.ne.s32.totalorder %s37, %s40
      %p46 = scmp.eq.s32.totalorder %s13, 0
      %p47 = por %p45, %p46
      %p48 = scmp.ne.s32.totalorder %s37, %s40
      %p49 = scmp.eq.s32.totalorder %s18, 1
      %p50 = por %p48, %p49
      %p51 = scmp.ne.s32.totalorder %s40, %s41
      %p52 = scmp.eq.s32.totalorder %s18, 0
      %p53 = por %p51, %p52
      %p54 = scmp.ne.s32.totalorder %s40, %s41
      %p55 = scmp.eq.s32.totalorder %s19, 1
      %p56 = por %p54, %p55
      %p58 = scmp.ne.s32.totalorder %s41, %s57
      %p59 = scmp.eq.s32.totalorder %s19, 0
      %p60 = por %p58, %p59
      %s61 = ssub.s32 %s20, %s32
      %p62 = scmp.eq.s32.totalorder %s61, 0
      %s64 = sadd.s32 %s63, 1
      %s65 = scalar_select %p62, %s63, %s64
      %p68 = pneg %p62
      %p69 = scmp.eq.s32.totalorder %s13, 1
      %p70 = por %p68, %p69
      %p71 = scmp.ne.s32.totalorder %s63, %s66
      %p72 = scmp.eq.s32.totalorder %s13, 0
      %p73 = por %p71, %p72
      %p74 = scmp.ne.s32.totalorder %s63, %s66
      %p75 = scmp.eq.s32.totalorder %s18, 1
      %p76 = por %p74, %p75
      %p77 = scmp.ne.s32.totalorder %s66, %s67
      %p78 = scmp.eq.s32.totalorder %s18, 0
      %p79 = por %p77, %p78
      %p80 = scmp.ne.s32.totalorder %s66, %s67
      %p81 = scmp.eq.s32.totalorder %s19, 1
      %p82 = por %p80, %p81
      %p84 = scmp.ne.s32.totalorder %s67, %s83
      %p85 = scmp.eq.s32.totalorder %s19, 0
      %p86 = por %p84, %p85
      %s88 = sadd.s32 %s87, 1
      %p91 = scmp.eq.s32.totalorder %s13, 1
      %p92 = scmp.ne.s32.totalorder %s87, %s89
      %p93 = scmp.eq.s32.totalorder %s13, 0
      %p94 = por %p92, %p93
      %p95 = scmp.ne.s32.totalorder %s87, %s89
      %p96 = scmp.eq.s32.totalorder %s18, 1
      %p97 = por %p95, %p96
      %p98 = scmp.ne.s32.totalorder %s89, %s90
      %p99 = scmp.eq.s32.totalorder %s18, 0
      %p100 = por %p98, %p99
      %p101 = scmp.ne.s32.totalorder %s89, %s90
      %p102 = scmp.eq.s32.totalorder %s19, 1
      %p103 = por %p101, %p102
      %p105 = scmp.ne.s32.totalorder %s90, %s104
      %p106 = scmp.eq.s32.totalorder %s19, 0
      %p107 = por %p105, %p106
      %s109 = sadd.s32 %s108, 1
      %p112 = scmp.eq.s32.totalorder %s13, 1
      %p113 = scmp.ne.s32.totalorder %s108, %s110
      %p114 = scmp.eq.s32.totalorder %s13, 0
      %p115 = por %p113, %p114
      %p116 = scmp.ne.s32.totalorder %s108, %s110
      %p117 = scmp.eq.s32.totalorder %s18, 1
      %p118 = por %p116, %p117
      %p119 = scmp.ne.s32.totalorder %s110, %s111
      %p120 = scmp.eq.s32.totalorder %s18, 0
      %p121 = por %p119, %p120
      %p122 = scmp.ne.s32.totalorder %s110, %s111
      %p123 = scmp.eq.s32.totalorder %s19, 1
      %p124 = por %p122, %p123
      %p126 = scmp.ne.s32.totalorder %s111, %s125
      %p127 = scmp.eq.s32.totalorder %s19, 0
      %p128 = por %p126, %p127
      %s129 = ssub.s32 %s20, %s32
      %s130 = ssub.s32 %s21, %s28
      %s131 = sor.u32 %s129, %s130
      %p132 = scmp.eq.s32.totalorder %s131, 0
      %s134 = sadd.s32 %s133, 1
      %s135 = scalar_select %p132, %s133, %s134
      %p138 = pneg %p132
      %p139 = scmp.eq.s32.totalorder %s13, 1
      %p140 = por %p138, %p139
      %p141 = scmp.ne.s32.totalorder %s133, %s136
      %p142 = scmp.eq.s32.totalorder %s13, 0
      %p143 = por %p141, %p142
      %p144 = scmp.ne.s32.totalorder %s133, %s136
      %p145 = scmp.eq.s32.totalorder %s18, 1
      %p146 = por %p144, %p145
      %p147 = scmp.ne.s32.totalorder %s136, %s137
      %p148 = scmp.eq.s32.totalorder %s18, 0
      %p149 = por %p147, %p148
      %p150 = scmp.ne.s32.totalorder %s136, %s137
      %p151 = scmp.eq.s32.totalorder %s19, 1
      %p152 = por %p150, %p151
      %p154 = scmp.ne.s32.totalorder %s137, %s153
      %p155 = scmp.eq.s32.totalorder %s19, 0
      %p156 = por %p154, %p155
      %p157 = scmp.le.s32.totalorder 1, %s13
      %p158 = scmp.lt.s32.totalorder %s13, 3
      %p159 = pnand %p157, %p158
      %p160 = pneg %p159
      // Predicated region
      $region9: #{upsample_network.3} parent=5 // pred_check
        _
      $region10: #{upsample_network.3} parent=5 // pred_check_branch
        %162 = sbr.rel (%p159) target = $region12
      $region11: #{upsample_network.3} parent=5 // pred_region
        %s163 = ssub.s32 %s13, 1
        // Predicated region
        $region13: #{upsample_network.3} parent=11 // pred_check
          %p164 = pneg %p100
        $region14: #{upsample_network.3} parent=11 // pred_check_branch
          %166 = sbr.rel (%p164) target = $region16
        $region15: #{upsample_network.3} parent=11 // pred_region
          _
        $region16: #{upsample_network.3} parent=11 // pred_fallthru
          _
        // Predicated region
        $region17: #{upsample_network.3} parent=11 // pred_check
          %p167 = pneg %p121
        $region18: #{upsample_network.3} parent=11 // pred_check_branch
          %169 = sbr.rel (%p167) target = $region20
        $region19: #{upsample_network.3} parent=11 // pred_region
          _
        $region20: #{upsample_network.3} parent=11 // pred_fallthru
          _
      $region12: #{upsample_network.3} parent=5 // pred_fallthru
        _
      %p170 = scmp.lt.s32.totalorder %s13, 2
      // Predicated region
      $region21: #{upsample_network.3} parent=5 // pred_check
        %p171 = pneg %p170
      $region22: #{upsample_network.3} parent=5 // pred_check_branch
        %173 = sbr.rel (%p171) target = $region24
      $region23: #{upsample_network.3} parent=5 // pred_region
        // Predicated region
        $region25: #{upsample_network.3} parent=23 // pred_check
          %p174 = pneg %p47
        $region26: #{upsample_network.3} parent=23 // pred_check_branch
          %176 = sbr.rel (%p174) target = $region28
        $region27: #{upsample_network.3} parent=23 // pred_region
          %p177 = scmp.lt.s32.totalorder %s20, 1
          %s178 = scalar_select %p177, %s20, 1
          %p179 = scmp.lt.s32.totalorder %s21, 0
          %s180 = scalar_select %p179, %s21, 0
          %s181 = sadd.s32 %s180, %s178
          %s182 = smul.addr %s181, 8
          %s183 = scalar_lea.vmem %s0, %s182
        $region28: #{upsample_network.3} parent=23 // pred_fallthru
          _
        // Predicated region
        $region29: #{upsample_network.3} parent=23 // pred_check
          %p184 = pneg %p73
        $region30: #{upsample_network.3} parent=23 // pred_check_branch
          %186 = sbr.rel (%p184) target = $region32
        $region31: #{upsample_network.3} parent=23 // pred_region
          %p187 = scmp.lt.s32.totalorder %s20, 1
          %s188 = scalar_select %p187, %s20, 1
          %s189 = smul.addr %s188, 8
          %s190 = scalar_lea.vmem %s1, %s189
        $region32: #{upsample_network.3} parent=23 // pred_fallthru
          _
      $region24: #{upsample_network.3} parent=5 // pred_fallthru
        _
      %p191 = scmp.le.s32.totalorder 1, %s13
      %p192 = scmp.lt.s32.totalorder %s13, 3
      %p193 = pnand %p191, %p192
      %p194 = pneg %p193
      // Predicated region
      $region33: #{upsample_network.3} parent=5 // pred_check
        _
      $region34: #{upsample_network.3} parent=5 // pred_check_branch
        %196 = sbr.rel (%p193) target = $region36
      $region35: #{upsample_network.3} parent=5 // pred_region
        %s197 = ssub.s32 %s13, 1
        %p198 = scmp.lt.s32.totalorder %s22, 1
        %s199 = scalar_select %p198, %s22, 1
        %p200 = scmp.lt.s32.totalorder %s23, 0
        %s201 = scalar_select %p200, %s23, 0
        %s202 = sadd.s32 %s201, %s199
        %s203 = smul.addr %s202, 8
        %s204 = scalar_lea.vmem %s0, %s203
        %p205 = pneg %p53
        %p206 = pneg %p50
        %p207 = scmp.lt.s32.totalorder %s22, 1
        %s208 = scalar_select %p207, %s22, 1
        %s209 = smul.addr %s208, 8
        %s210 = scalar_lea.vmem %s1, %s209
        %p211 = pneg %p79
        %p212 = pneg %p76
        %p213 = pneg %p100
        %p214 = pneg %p97
        %p215 = pneg %p121
        %p216 = pneg %p118
        %p217 = pneg %p149
        %p218 = pneg %p146
        %s219 = sand.u32 %s136, 1
        %s220 = scalar_lea.sflag [#allocation3], %s219
        %s221 = sand.u32 %s136, 1
        %s222 = smul.addr %s221, 8
        %s223 = scalar_lea.vmem [#allocation2], %s222
        %p224 = scmp.lt.s32.totalorder %s22, 1
        %s225 = scalar_select %p224, %s22, 1
        %p226 = scmp.lt.s32.totalorder %s23, 0
        %s227 = scalar_select %p226, %s23, 0
        %s228 = sadd.s32 %s227, %s225
        %s229 = smul.addr %s228, 8
        %s230 = scalar_lea.vmem %s0, %s229
        %p231 = scmp.lt.s32.totalorder %s22, 1
        %s232 = scalar_select %p231, %s22, 1
        %s233 = smul.addr %s232, 8
        %s234 = scalar_lea.vmem %s1, %s233
        %v236 = vld [vmem:[%s230] sm:$0xff]
        %v237 = vpack.c.bf16 %v236, %v236
        %v238 = vunpack.c.l.bf16 %v237
        %v239 = vsub.f32 %v236, %v238
        %v240 = vpack.c.bf16 %v239, %v239
        %v241 = vld [vmem:[%s2] sm:$0xf]
        %v242 = vld [vmem:[%s2 + $0x4] sm:$0xf]
        %v243 = vld [vmem:[%s2 + $0x8] sm:$0xf]
        %v244 = vld [vmem:[%s2 + $0xc] sm:$0xf]
        %v249 = vunpack.c.l.b16 %v241
        %v250 = vunpack.c.l.b16 %v242
        %v251 = vunpack.c.l.b16 %v243
        %v252 = vunpack.c.l.b16 %v244
        %v253 = vpack.c.b16 %v250, %v249
        %v254 = vpack.c.b16 %v252, %v251
        %vm257 = vcmask 261120
        %v259 = vsel %vm257, %v240, 0
        %261 = vmatprep.subr.bf16.mxu0 0
        %262 = vmatpush1.bf16.msra.mxu0 0
        %263 = vmatprep.subr.bf16.mxu0 0
        %264 = vmatpush1.bf16.msra.mxu0 0
        %265 = vmatprep.subr.bf16.mxu0 0
        %266 = vmatpush1.bf16.msra.mxu0 0
        %267 = vmatprep.subr.bf16.mxu0 0
        %268 = vmatpush1.bf16.msra.mxu0 0
        %269 = vmatprep.subr.bf16.mxu0 0
        %270 = vmatpush1.bf16.msra.mxu0 0
        %271 = vmatprep.subr.bf16.mxu0 0
        %272 = vmatpush1.bf16.msra.mxu0 0
        %273 = vmatprep.subr.bf16.mxu0 0
        %274 = vmatpush1.bf16.msra.mxu0 %v254
        %275 = vmatprep.subr.bf16.mxu0 0
        %276 = vmatpush1.bf16.msra.mxu0 %v253
        %277 = vmatprep.subr.bf16.mxu0 0
        %278 = vmatpush2.bf16.msra.mxu0 0
        %279 = vmatprep.subr.bf16.mxu0 0
        %280 = vmatpush2.bf16.msra.mxu0 0
        %281 = vmatprep.subr.bf16.mxu0 0
        %282 = vmatpush2.bf16.msra.mxu0 0
        %283 = vmatprep.subr.bf16.mxu0 0
        %284 = vmatpush2.bf16.msra.mxu0 0
        %285 = vmatprep.subr.bf16.mxu0 0
        %286 = vmatpush2.bf16.msra.mxu0 0
        %287 = vmatprep.subr.bf16.mxu0 0
        %288 = vmatpush2.bf16.msra.mxu0 0
        %289 = vmatprep.subr.bf16.mxu0 0
        %290 = vmatpush2.bf16.msra.mxu0 0
        %291 = vmatprep.subr.bf16.mxu0 0
        %292 = vmatpush2.bf16.msra.mxu0 0
        %293 = vmatprep.mubr.bf16.mxu0 0
        %294 = vmatmul.mubr.bf16.gmra.mxu0 %v259
        %v295 = vpop.f32.mrf.mxu0
        %v296 = vadd.f32 0.0, %v295
        %v297 = vpop.f32.mrf.mxu0
        %v298 = vpop.f32.mrf.mxu0
        %v299 = vpop.f32.mrf.mxu0
        %300 = vdwg.mxu0
        %v302 = vsel %vm257, %v237, 0
        %304 = vmatprep.subr.bf16.mxu0 0
        %305 = vmatpush1.bf16.msra.mxu0 0
        %306 = vmatprep.subr.bf16.mxu0 0
        %307 = vmatpush1.bf16.msra.mxu0 0
        %308 = vmatprep.subr.bf16.mxu0 0
        %309 = vmatpush1.bf16.msra.mxu0 0
        %310 = vmatprep.subr.bf16.mxu0 0
        %311 = vmatpush1.bf16.msra.mxu0 0
        %312 = vmatprep.subr.bf16.mxu0 0
        %313 = vmatpush1.bf16.msra.mxu0 0
        %314 = vmatprep.subr.bf16.mxu0 0
        %315 = vmatpush1.bf16.msra.mxu0 0
        %316 = vmatprep.subr.bf16.mxu0 0
        %317 = vmatpush1.bf16.msra.mxu0 %v254
        %318 = vmatprep.subr.bf16.mxu0 0
        %319 = vmatpush1.bf16.msra.mxu0 %v253
        %320 = vmatprep.subr.bf16.mxu0 0
        %321 = vmatpush2.bf16.msra.mxu0 0
        %322 = vmatprep.subr.bf16.mxu0 0
        %323 = vmatpush2.bf16.msra.mxu0 0
        %324 = vmatprep.subr.bf16.mxu0 0
        %325 = vmatpush2.bf16.msra.mxu0 0
        %326 = vmatprep.subr.bf16.mxu0 0
        %327 = vmatpush2.bf16.msra.mxu0 0
        %328 = vmatprep.subr.bf16.mxu0 0
        %329 = vmatpush2.bf16.msra.mxu0 0
        %330 = vmatprep.subr.bf16.mxu0 0
        %331 = vmatpush2.bf16.msra.mxu0 0
        %332 = vmatprep.subr.bf16.mxu0 0
        %333 = vmatpush2.bf16.msra.mxu0 0
        %334 = vmatprep.subr.bf16.mxu0 0
        %335 = vmatpush2.bf16.msra.mxu0 0
        %336 = vmatprep.mubr.bf16.mxu0 0
        %337 = vmatmul.mubr.bf16.gmra.mxu0 %v302
        %v338 = vpop.f32.mrf.mxu0
        %v339 = vadd.f32 %v296, %v338
        %v340 = vpop.f32.mrf.mxu0
        %v341 = vpop.f32.mrf.mxu0
        %v342 = vpop.f32.mrf.mxu0
        %343 = vdwg.mxu0
        %s344 = smul.u32 %s23, 8
        %s345 = scalar_lea.vmem %s234, %s344
        %v346 = vld [vmem:[%s345] sm:$0xff]
        %v347 = vld [vmem:[%s3] sm:$0x1]
        %349 = vset.pattern.permute.xlu0 0
        %350 = vperm.xlu0 %349, %v346
        %v351 = vpop.permute.xlu0 %350
        %v353 = vlaneseq
        %v354 = vshrl.u32 %v353, 7
        %v355 = vsub.s32 0, %v354
        %v356 = vrot.slane %v347, %v355
        %v357 = vmul.f32 %v351, %v356
        %v358 = vadd.f32 %v339, %v357
        %v359 = vld [vmem:[%s3 + $0x1] sm:$0x1]
        %360 = vset.pattern.permute.xlu0 1
        %361 = vperm.xlu0 %360, %v346
        %v362 = vpop.permute.xlu0 %361
        %v364 = vlaneseq
        %v365 = vshrl.u32 %v364, 7
        %v366 = vsub.s32 0, %v365
        %v367 = vrot.slane %v359, %v366
        %v368 = vmul.f32 %v362, %v367
        %v369 = vadd.f32 %v358, %v368
        %v370 = vmul.f32 %v369, 0.14285715
        %vm371 = vcmask 785408
        %372 = vst.msk [vmem:[%s223] sm:$0xff] %vm371, %v370
        %s373 = sand.u32 %s136, 1
        %s374 = scalar_lea.sflag [#allocation3], %s373
        %s375 = sand.u32 %s136, 1
        %s376 = smul.addr %s375, 8
        %s377 = scalar_lea.vmem [#allocation2], %s376
        // Predicated region
        $region37: #{upsample_network.3} parent=35 // pred_check
          %p378 = pneg %p146
        $region38: #{upsample_network.3} parent=35 // pred_check_branch
          %380 = sbr.rel (%p378) target = $region40
        $region39: #{upsample_network.3} parent=35 // pred_region
          %s382 = ssub.s32 128, 128
          %383 = vsyncadd %s374, %s382
          %s384 = sadd.s32 %s23, %s22
          %s385 = smul.addr %s384, 128
          %s386 = scalar_lea.hbm %s4, %s385
          %s388 = sshll.u32 %s377, 4
          %s389 = int_to_ptr.vmem [resolvable:$true] %s388
          %391 = dma.vmem_to_hbm [thread:$0]  %s389, 128, %s386, %s374
        $region40: #{upsample_network.3} parent=35 // pred_fallthru
          _
      $region36: #{upsample_network.3} parent=5 // pred_fallthru
        _
      %p392 = scmp.le.s32.totalorder 2, %s13
      // Predicated region
      $region41: #{upsample_network.3} parent=5 // pred_check
        %p393 = pneg %p392
      $region42: #{upsample_network.3} parent=5 // pred_check_branch
        %395 = sbr.rel (%p393) target = $region44
      $region43: #{upsample_network.3} parent=5 // pred_region
        %s396 = ssub.s32 %s13, 2
        // Predicated region
        $region45: #{upsample_network.3} parent=43 // pred_check
          %p397 = pneg %p152
        $region46: #{upsample_network.3} parent=43 // pred_check_branch
          %399 = sbr.rel (%p397) target = $region48
        $region47: #{upsample_network.3} parent=43 // pred_region
          %s400 = sand.u32 %s137, 1
          %s401 = scalar_lea.sflag [#allocation3], %s400
          %s402 = sand.u32 %s137, 1
          %s403 = smul.addr %s402, 8
          %s404 = scalar_lea.vmem [#allocation2], %s403
          %405 = dma.done %s401, 128
        $region48: #{upsample_network.3} parent=43 // pred_fallthru
          _
      $region44: #{upsample_network.3} parent=5 // pred_fallthru
        _
    $region6: #{upsample_network.3} parent=1 // loop_footer
      %s17 = sadd.s32 1, %s13
    $region7: #{upsample_network.3} parent=1 // loop_footer_branch
      %12 = sbr.rel target = $region3
    $region8: #{upsample_network.3} parent=1 // loop_exit
      _
    %406 = vsyncpa [#allocation3], 1
    %s407 = scalar_lea.sflag [#allocation3], 1
    %408 = vsyncpa %s407, 1

// kernel: upsample_network.2
$region0: #{upsample_network.2}
  #allocation0 [shape = 'u32[]', space=smem, size = 0x4, offset = 0x4, fixed_abs, tag = 'smem constant byte address 0x4 - core index']
  #allocation1 [shape = 'u32[144,128]{1,0:T(1,128)}', space=vmem, size = 0x12000, scoped, tag = 'internal scratch']
  %s0 = inlined_call_operand.vmem [shape: f32[2,8,16], index: 0, kind: input, shape index: {}]
  %s1 = inlined_call_operand.vmem [shape: f32[2,1,8,2], index: 1, kind: input, shape index: {}]
  %s2 = inlined_call_operand.vmem [shape: bf16[16,32], index: 2, kind: input, shape index: {}]
  %s3 = inlined_call_operand.vmem [shape: f32[2,32], index: 3, kind: input, shape index: {}]
  %s4 = inlined_call_operand.vmem [shape: f32[2,8,32], index: 4, kind: output, shape index: {}]
  %s5 = sld [smem:[#allocation0]]
  $region49: #{upsample_network.2} parent=0
    _
  %s7 = ssub.s32 1, %s5
  %s8 = scalar_select 0, %s7, %s5
  loop: start=0, step=1, limit=4
  $region2: #{upsample_network.2} parent=0 // loop_pre_header
    _
  $region3: #{upsample_network.2} parent=0 // loop_header
    %s10 = sphi 0, %s14
    %p11 = scmp.ge.s32.totalorder %s10, 4
    %s17 = sphi 0, %s29
    %s18 = sphi 0, %s25
    %s19 = sphi 0, %s17
    %s20 = sphi 0, %s18
    %s21 = sphi 0, %s19
    %s22 = sphi 0, %s20
    %s34 = sphi 0, %s36
    %s37 = sphi 0, %s34
    %s38 = sphi 0, %s37
    %s54 = sphi 0, %s38
    %s60 = sphi 0, %s62
    %s63 = sphi 0, %s60
    %s64 = sphi 0, %s63
    %s80 = sphi 0, %s64
    %s84 = sphi 0, %s84
    %s86 = sphi 0, %s84
    %s87 = sphi 0, %s86
    %s101 = sphi 0, %s87
    %s105 = sphi 0, %s105
    %s107 = sphi 0, %s105
    %s108 = sphi 0, %s107
    %s122 = sphi 0, %s108
    %s130 = sphi 0, %s132
    %s133 = sphi 0, %s130
    %s134 = sphi 0, %s133
    %s150 = sphi 0, %s134
  $region4: #{upsample_network.2} parent=0 // loop_header_branch
    %13 = sbr.rel (%p11) target = $region8
  $region5: #{upsample_network.2} parent=0 // loop_body
    %s15 = ssub.s32 %s10, 1
    %s16 = ssub.s32 %s10, 2
    %s23 = sadd.s32 1, %s18
    %p24 = scmp.ge.s32.totalorder %s23, 1
    %s25 = scalar_select %p24, 0, %s23
    %s26 = sadd.s32 1, %s17
    %s27 = scalar_select %p24, %s26, %s17
    %p28 = scmp.ge.s32.totalorder %s27, 2
    %s29 = scalar_select %p28, 0, %s27
    %s30 = ssub.s32 %s17, %s29
    %s31 = ssub.s32 %s18, %s25
    %s32 = sor.u32 %s30, %s31
    %p33 = scmp.eq.s32.totalorder %s32, 0
    %s35 = sadd.s32 %s34, 1
    %s36 = scalar_select %p33, %s34, %s35
    %p39 = pneg %p33
    %p40 = scmp.eq.s32.totalorder %s10, 1
    %p41 = por %p39, %p40
    %p42 = scmp.ne.s32.totalorder %s34, %s37
    %p43 = scmp.eq.s32.totalorder %s10, 0
    %p44 = por %p42, %p43
    %p45 = scmp.ne.s32.totalorder %s34, %s37
    %p46 = scmp.eq.s32.totalorder %s15, 1
    %p47 = por %p45, %p46
    %p48 = scmp.ne.s32.totalorder %s37, %s38
    %p49 = scmp.eq.s32.totalorder %s15, 0
    %p50 = por %p48, %p49
    %p51 = scmp.ne.s32.totalorder %s37, %s38
    %p52 = scmp.eq.s32.totalorder %s16, 1
    %p53 = por %p51, %p52
    %p55 = scmp.ne.s32.totalorder %s38, %s54
    %p56 = scmp.eq.s32.totalorder %s16, 0
    %p57 = por %p55, %p56
    %s58 = ssub.s32 %s17, %s29
    %p59 = scmp.eq.s32.totalorder %s58, 0
    %s61 = sadd.s32 %s60, 1
    %s62 = scalar_select %p59, %s60, %s61
    %p65 = pneg %p59
    %p66 = scmp.eq.s32.totalorder %s10, 1
    %p67 = por %p65, %p66
    %p68 = scmp.ne.s32.totalorder %s60, %s63
    %p69 = scmp.eq.s32.totalorder %s10, 0
    %p70 = por %p68, %p69
    %p71 = scmp.ne.s32.totalorder %s60, %s63
    %p72 = scmp.eq.s32.totalorder %s15, 1
    %p73 = por %p71, %p72
    %p74 = scmp.ne.s32.totalorder %s63, %s64
    %p75 = scmp.eq.s32.totalorder %s15, 0
    %p76 = por %p74, %p75
    %p77 = scmp.ne.s32.totalorder %s63, %s64
    %p78 = scmp.eq.s32.totalorder %s16, 1
    %p79 = por %p77, %p78
    %p81 = scmp.ne.s32.totalorder %s64, %s80
    %p82 = scmp.eq.s32.totalorder %s16, 0
    %p83 = por %p81, %p82
    %s85 = sadd.s32 %s84, 1
    %p88 = scmp.eq.s32.totalorder %s10, 1
    %p89 = scmp.ne.s32.totalorder %s84, %s86
    %p90 = scmp.eq.s32.totalorder %s10, 0
    %p91 = por %p89, %p90
    %p92 = scmp.ne.s32.totalorder %s84, %s86
    %p93 = scmp.eq.s32.totalorder %s15, 1
    %p94 = por %p92, %p93
    %p95 = scmp.ne.s32.totalorder %s86, %s87
    %p96 = scmp.eq.s32.totalorder %s15, 0
    %p97 = por %p95, %p96
    %p98 = scmp.ne.s32.totalorder %s86, %s87
    %p99 = scmp.eq.s32.totalorder %s16, 1
    %p100 = por %p98, %p99
    %p102 = scmp.ne.s32.totalorder %s87, %s101
    %p103 = scmp.eq.s32.totalorder %s16, 0
    %p104 = por %p102, %p103
    %s106 = sadd.s32 %s105, 1
    %p109 = scmp.eq.s32.totalorder %s10, 1
    %p110 = scmp.ne.s32.totalorder %s105, %s107
    %p111 = scmp.eq.s32.totalorder %s10, 0
    %p112 = por %p110, %p111
    %p113 = scmp.ne.s32.totalorder %s105, %s107
    %p114 = scmp.eq.s32.totalorder %s15, 1
    %p115 = por %p113, %p114
    %p116 = scmp.ne.s32.totalorder %s107, %s108
    %p117 = scmp.eq.s32.totalorder %s15, 0
    %p118 = por %p116, %p117
    %p119 = scmp.ne.s32.totalorder %s107, %s108
    %p120 = scmp.eq.s32.totalorder %s16, 1
    %p121 = por %p119, %p120
    %p123 = scmp.ne.s32.totalorder %s108, %s122
    %p124 = scmp.eq.s32.totalorder %s16, 0
    %p125 = por %p123, %p124
    %s126 = ssub.s32 %s17, %s29
    %s127 = ssub.s32 %s18, %s25
    %s128 = sor.u32 %s126, %s127
    %p129 = scmp.eq.s32.totalorder %s128, 0
    %s131 = sadd.s32 %s130, 1
    %s132 = scalar_select %p129, %s130, %s131
    %p135 = pneg %p129
    %p136 = scmp.eq.s32.totalorder %s10, 1
    %p137 = por %p135, %p136
    %p138 = scmp.ne.s32.totalorder %s130, %s133
    %p139 = scmp.eq.s32.totalorder %s10, 0
    %p140 = por %p138, %p139
    %p141 = scmp.ne.s32.totalorder %s130, %s133
    %p142 = scmp.eq.s32.totalorder %s15, 1
    %p143 = por %p141, %p142
    %p144 = scmp.ne.s32.totalorder %s133, %s134
    %p145 = scmp.eq.s32.totalorder %s15, 0
    %p146 = por %p144, %p145
    %p147 = scmp.ne.s32.totalorder %s133, %s134
    %p148 = scmp.eq.s32.totalorder %s16, 1
    %p149 = por %p147, %p148
    %p151 = scmp.ne.s32.totalorder %s134, %s150
    %p152 = scmp.eq.s32.totalorder %s16, 0
    %p153 = por %p151, %p152
    %p154 = scmp.le.s32.totalorder 1, %s10
    %p155 = scmp.lt.s32.totalorder %s10, 3
    %p156 = pnand %p154, %p155
    %p157 = pneg %p156
    // Predicated region
    $region9: #{upsample_network.2} parent=5 // pred_check
      _
    $region10: #{upsample_network.2} parent=5 // pred_check_branch
      %159 = sbr.rel (%p156) target = $region12
    $region11: #{upsample_network.2} parent=5 // pred_region
      %s160 = ssub.s32 %s10, 1
      // Predicated region
      $region13: #{upsample_network.2} parent=11 // pred_check
        %p161 = pneg %p97
      $region14: #{upsample_network.2} parent=11 // pred_check_branch
        %163 = sbr.rel (%p161) target = $region16
      $region15: #{upsample_network.2} parent=11 // pred_region
        _
      $region16: #{upsample_network.2} parent=11 // pred_fallthru
        _
      // Predicated region
      $region17: #{upsample_network.2} parent=11 // pred_check
        %p164 = pneg %p118
      $region18: #{upsample_network.2} parent=11 // pred_check_branch
        %166 = sbr.rel (%p164) target = $region20
      $region19: #{upsample_network.2} parent=11 // pred_region
        _
      $region20: #{upsample_network.2} parent=11 // pred_fallthru
        _
    $region12: #{upsample_network.2} parent=5 // pred_fallthru
      _
    %p167 = scmp.lt.s32.totalorder %s10, 2
    // Predicated region
    $region21: #{upsample_network.2} parent=5 // pred_check
      %p168 = pneg %p167
    $region22: #{upsample_network.2} parent=5 // pred_check_branch
      %170 = sbr.rel (%p168) target = $region24
    $region23: #{upsample_network.2} parent=5 // pred_region
      // Predicated region
      $region25: #{upsample_network.2} parent=23 // pred_check
        %p171 = pneg %p44
      $region26: #{upsample_network.2} parent=23 // pred_check_branch
        %173 = sbr.rel (%p171) target = $region28
      $region27: #{upsample_network.2} parent=23 // pred_region
        %p174 = scmp.lt.s32.totalorder %s17, 1
        %s175 = scalar_select %p174, %s17, 1
        %p176 = scmp.lt.s32.totalorder %s18, 0
        %s177 = scalar_select %p176, %s18, 0
        %s178 = sadd.s32 %s177, %s175
        %s179 = smul.addr %s178, 8
        %s180 = scalar_lea.vmem %s0, %s179
      $region28: #{upsample_network.2} parent=23 // pred_fallthru
        _
      // Predicated region
      $region29: #{upsample_network.2} parent=23 // pred_check
        %p181 = pneg %p70
      $region30: #{upsample_network.2} parent=23 // pred_check_branch
        %183 = sbr.rel (%p181) target = $region32
      $region31: #{upsample_network.2} parent=23 // pred_region
        %p184 = scmp.lt.s32.totalorder %s17, 1
        %s185 = scalar_select %p184, %s17, 1
        %s186 = smul.addr %s185, 8
        %s187 = scalar_lea.vmem %s1, %s186
      $region32: #{upsample_network.2} parent=23 // pred_fallthru
        _
    $region24: #{upsample_network.2} parent=5 // pred_fallthru
      _
    %p188 = scmp.le.s32.totalorder 1, %s10
    %p189 = scmp.lt.s32.totalorder %s10, 3
    %p190 = pnand %p188, %p189
    %p191 = pneg %p190
    // Predicated region
    $region33: #{upsample_network.2} parent=5 // pred_check
      _
    $region34: #{upsample_network.2} parent=5 // pred_check_branch
      %193 = sbr.rel (%p190) target = $region36
    $region35: #{upsample_network.2} parent=5 // pred_region
      %s194 = ssub.s32 %s10, 1
      %p195 = scmp.lt.s32.totalorder %s19, 1
      %s196 = scalar_select %p195, %s19, 1
      %p197 = scmp.lt.s32.totalorder %s20, 0
      %s198 = scalar_select %p197, %s20, 0
      %s199 = sadd.s32 %s198, %s196
      %s200 = smul.addr %s199, 8
      %s201 = scalar_lea.vmem %s0, %s200
      %p202 = pneg %p50
      %p203 = pneg %p47
      %p204 = scmp.lt.s32.totalorder %s19, 1
      %s205 = scalar_select %p204, %s19, 1
      %s206 = smul.addr %s205, 8
      %s207 = scalar_lea.vmem %s1, %s206
      %p208 = pneg %p76
      %p209 = pneg %p73
      %p210 = pneg %p97
      %p211 = pneg %p94
      %p212 = pneg %p118
      %p213 = pneg %p115
      %p214 = pneg %p146
      %p215 = pneg %p143
      %p216 = scmp.lt.s32.totalorder %s19, 1
      %s217 = scalar_select %p216, %s19, 1
      %p218 = scmp.lt.s32.totalorder %s20, 0
      %s219 = scalar_select %p218, %s20, 0
      %s220 = sadd.s32 %s219, %s217
      %s221 = smul.addr %s220, 8
      %s222 = scalar_lea.vmem %s4, %s221
      %p223 = scmp.lt.s32.totalorder %s19, 1
      %s224 = scalar_select %p223, %s19, 1
      %p225 = scmp.lt.s32.totalorder %s20, 0
      %s226 = scalar_select %p225, %s20, 0
      %s227 = sadd.s32 %s226, %s224
      %s228 = smul.addr %s227, 8
      %s229 = scalar_lea.vmem %s0, %s228
      %p230 = scmp.lt.s32.totalorder %s19, 1
      %s231 = scalar_select %p230, %s19, 1
      %s232 = smul.addr %s231, 8
      %s233 = scalar_lea.vmem %s1, %s232
      %p234 = scmp.lt.s32.totalorder %s19, 1
      %s235 = scalar_select %p234, %s19, 1
      %p236 = scmp.lt.s32.totalorder %s20, 0
      %s237 = scalar_select %p236, %s20, 0
      %s238 = sadd.s32 %s237, %s235
      %s239 = smul.addr %s238, 8
      %s240 = scalar_lea.vmem %s4, %s239
      %v242 = vld [vmem:[%s229] sm:$0xff]
      %v243 = vpack.c.bf16 %v242, %v242
      %v244 = vunpack.c.l.bf16 %v243
      %v245 = vsub.f32 %v242, %v244
      %v246 = vpack.c.bf16 %v245, %v245
      %v247 = vld [vmem:[%s2] sm:$0xf]
      %v248 = vld [vmem:[%s2 + $0x4] sm:$0xf]
      %v251 = vunpack.c.l.b16 %v247
      %v252 = vunpack.c.l.b16 %v248
      %v253 = vpack.c.b16 %v252, %v251
      %vm255 = vcmask 130048
      %v257 = vsel %vm255, %v246, 0
      %259 = vmatprep.subr.bf16.mxu0 0
      %260 = vmatpush1.bf16.msra.mxu0 0
      %261 = vmatprep.subr.bf16.mxu0 0
      %262 = vmatpush1.bf16.msra.mxu0 0
      %263 = vmatprep.subr.bf16.mxu0 0
      %264 = vmatpush1.bf16.msra.mxu0 0
      %265 = vmatprep.subr.bf16.mxu0 0
      %266 = vmatpush1.bf16.msra.mxu0 0
      %267 = vmatprep.subr.bf16.mxu0 0
      %268 = vmatpush1.bf16.msra.mxu0 0
      %269 = vmatprep.subr.bf16.mxu0 0
      %270 = vmatpush1.bf16.msra.mxu0 0
      %271 = vmatprep.subr.bf16.mxu0 0
      %272 = vmatpush1.bf16.msra.mxu0 0
      %273 = vmatprep.subr.bf16.mxu0 0
      %274 = vmatpush1.bf16.msra.mxu0 %v253
      %275 = vmatprep.subr.bf16.mxu0 0
      %276 = vmatpush2.bf16.msra.mxu0 0
      %277 = vmatprep.subr.bf16.mxu0 0
      %278 = vmatpush2.bf16.msra.mxu0 0
      %279 = vmatprep.subr.bf16.mxu0 0
      %280 = vmatpush2.bf16.msra.mxu0 0
      %281 = vmatprep.subr.bf16.mxu0 0
      %282 = vmatpush2.bf16.msra.mxu0 0
      %283 = vmatprep.subr.bf16.mxu0 0
      %284 = vmatpush2.bf16.msra.mxu0 0
      %285 = vmatprep.subr.bf16.mxu0 0
      %286 = vmatpush2.bf16.msra.mxu0 0
      %287 = vmatprep.subr.bf16.mxu0 0
      %288 = vmatpush2.bf16.msra.mxu0 0
      %289 = vmatprep.subr.bf16.mxu0 0
      %290 = vmatpush2.bf16.msra.mxu0 0
      %291 = vmatprep.mubr.bf16.mxu0 0
      %292 = vmatmul.mubr.bf16.gmra.mxu0 %v257
      %v293 = vpop.f32.mrf.mxu0
      %v294 = vadd.f32 0.0, %v293
      %v295 = vpop.f32.mrf.mxu0
      %v296 = vpop.f32.mrf.mxu0
      %v297 = vpop.f32.mrf.mxu0
      %298 = vdwg.mxu0
      %v300 = vsel %vm255, %v243, 0
      %302 = vmatprep.subr.bf16.mxu0 0
      %303 = vmatpush1.bf16.msra.mxu0 0
      %304 = vmatprep.subr.bf16.mxu0 0
      %305 = vmatpush1.bf16.msra.mxu0 0
      %306 = vmatprep.subr.bf16.mxu0 0
      %307 = vmatpush1.bf16.msra.mxu0 0
      %308 = vmatprep.subr.bf16.mxu0 0
      %309 = vmatpush1.bf16.msra.mxu0 0
      %310 = vmatprep.subr.bf16.mxu0 0
      %311 = vmatpush1.bf16.msra.mxu0 0
      %312 = vmatprep.subr.bf16.mxu0 0
      %313 = vmatpush1.bf16.msra.mxu0 0
      %314 = vmatprep.subr.bf16.mxu0 0
      %315 = vmatpush1.bf16.msra.mxu0 0
      %316 = vmatprep.subr.bf16.mxu0 0
      %317 = vmatpush1.bf16.msra.mxu0 %v253
      %318 = vmatprep.subr.bf16.mxu0 0
      %319 = vmatpush2.bf16.msra.mxu0 0
      %320 = vmatprep.subr.bf16.mxu0 0
      %321 = vmatpush2.bf16.msra.mxu0 0
      %322 = vmatprep.subr.bf16.mxu0 0
      %323 = vmatpush2.bf16.msra.mxu0 0
      %324 = vmatprep.subr.bf16.mxu0 0
      %325 = vmatpush2.bf16.msra.mxu0 0
      %326 = vmatprep.subr.bf16.mxu0 0
      %327 = vmatpush2.bf16.msra.mxu0 0
      %328 = vmatprep.subr.bf16.mxu0 0
      %329 = vmatpush2.bf16.msra.mxu0 0
      %330 = vmatprep.subr.bf16.mxu0 0
      %331 = vmatpush2.bf16.msra.mxu0 0
      %332 = vmatprep.subr.bf16.mxu0 0
      %333 = vmatpush2.bf16.msra.mxu0 0
      %334 = vmatprep.mubr.bf16.mxu0 0
      %335 = vmatmul.mubr.bf16.gmra.mxu0 %v300
      %v336 = vpop.f32.mrf.mxu0
      %v337 = vadd.f32 %v294, %v336
      %v338 = vpop.f32.mrf.mxu0
      %v339 = vpop.f32.mrf.mxu0
      %v340 = vpop.f32.mrf.mxu0
      %341 = vdwg.mxu0
      %s342 = smul.u32 %s20, 8
      %s343 = scalar_lea.vmem %s233, %s342
      %v344 = vld [vmem:[%s343] sm:$0xff]
      %v345 = vld [vmem:[%s3] sm:$0x1]
      %347 = vset.pattern.permute.xlu0 0
      %348 = vperm.xlu0 %347, %v344
      %v349 = vpop.permute.xlu0 %348
      %v351 = vlaneseq
      %v352 = vshrl.u32 %v351, 7
      %v353 = vsub.s32 0, %v352
      %v354 = vrot.slane %v345, %v353
      %v355 = vmul.f32 %v349, %v354
      %v356 = vadd.f32 %v337, %v355
      %v357 = vld [vmem:[%s3 + $0x1] sm:$0x1]
      %358 = vset.pattern.permute.xlu0 1
      %359 = vperm.xlu0 %358, %v344
      %v360 = vpop.permute.xlu0 %359
      %v362 = vlaneseq
      %v363 = vshrl.u32 %v362, 7
      %v364 = vsub.s32 0, %v363
      %v365 = vrot.slane %v357, %v364
      %v366 = vmul.f32 %v360, %v365
      %v367 = vadd.f32 %v356, %v366
      %v368 = vmul.f32 %v367, 0.2
      %vm369 = vcmask 261120
      %370 = vst.msk [vmem:[%s240] sm:$0xff] %vm369, %v368
      %p371 = scmp.lt.s32.totalorder %s19, 1
      %s372 = scalar_select %p371, %s19, 1
      %p373 = scmp.lt.s32.totalorder %s20, 0
      %s374 = scalar_select %p373, %s20, 0
      %s375 = sadd.s32 %s374, %s372
      %s376 = smul.addr %s375, 8
      %s377 = scalar_lea.vmem %s4, %s376
      // Predicated region
      $region37: #{upsample_network.2} parent=35 // pred_check
        %p378 = pneg %p143
      $region38: #{upsample_network.2} parent=35 // pred_check_branch
        %380 = sbr.rel (%p378) target = $region40
      $region39: #{upsample_network.2} parent=35 // pred_region
        _
      $region40: #{upsample_network.2} parent=35 // pred_fallthru
        _
    $region36: #{upsample_network.2} parent=5 // pred_fallthru
      _
    %p381 = scmp.le.s32.totalorder 2, %s10
    // Predicated region
    $region41: #{upsample_network.2} parent=5 // pred_check
      %p382 = pneg %p381
    $region42: #{upsample_network.2} parent=5 // pred_check_branch
      %384 = sbr.rel (%p382) target = $region44
    $region43: #{upsample_network.2} parent=5 // pred_region
      %s385 = ssub.s32 %s10, 2
      // Predicated region
      $region45: #{upsample_network.2} parent=43 // pred_check
        %p386 = pneg %p149
      $region46: #{upsample_network.2} parent=43 // pred_check_branch
        %388 = sbr.rel (%p386) target = $region48
      $region47: #{upsample_network.2} parent=43 // pred_region
        %p389 = scmp.lt.s32.totalorder %s21, 1
        %s390 = scalar_select %p389, %s21, 1
        %p391 = scmp.lt.s32.totalorder %s22, 0
        %s392 = scalar_select %p391, %s22, 0
        %s393 = sadd.s32 %s392, %s390
        %s394 = smul.addr %s393, 8
        %s395 = scalar_lea.vmem %s4, %s394
      $region48: #{upsample_network.2} parent=43 // pred_fallthru
        _
    $region44: #{upsample_network.2} parent=5 // pred_fallthru
      _
  $region6: #{upsample_network.2} parent=0 // loop_footer
    %s14 = sadd.s32 1, %s10
  $region7: #{upsample_network.2} parent=0 // loop_footer_branch
    %9 = sbr.rel target = $region3
  $region8: #{upsample_network.2} parent=0 // loop_exit
    _

</llo_original>
